<compile_context>
chip_gen: v5e
topology: v5e:2x2
jax: 0.10.0
libtpu: 0.0.40
codegen_flags: <defaults>
</compile_context>

<pallas_src>
import functools

import jax
import jax.numpy as jnp
from jax.experimental import pallas as pl
from jax.experimental.pallas import tpu as pltpu

_LANE = 128
_SUBLANE = 8


def _ctc_loss_kernel(vid_ref, txt_ref, pos_ref, vmask_ref, tmask_ref, out_ref,
                     *, inv_temperature, t_valid):
    eps = 1e-12
    f32 = jnp.float32

    v = vid_ref[...].astype(f32)         # (TB, t_pad, d_pad)
    x = txt_ref[...].astype(f32)         # (TB, n_pad, d_pad)
    # pos_mask is a binary label mask; single cast replicates .long().float().
    y = pos_ref[...].astype(f32)         # (TB, t_pad)
    vmask = vmask_ref[...].astype(f32)   # (TB, t_pad)
    tmask = tmask_ref[...].astype(f32)   # (TB, n_pad)

    # F.normalize(dim=2): x / max(||x||, eps) == x * rsqrt(max(||x||^2, eps^2)).
    # rsqrt goes to the EUP (separate VLIW slot) instead of a full-tensor divide.
    v = v * jax.lax.rsqrt(
        jnp.maximum(jnp.sum(v * v, axis=-1, keepdims=True), eps * eps))
    x = x * jax.lax.rsqrt(
        jnp.maximum(jnp.sum(x * x, axis=-1, keepdims=True), eps * eps))

    # Masked mean-pool of text tokens -> (TB, d_pad). Zero-padded tokens carry
    # tmask == 0, so they drop out of both numerator and denominator.
    x = x * tmask[:, :, None]
    cnt = jnp.sum(tmask, axis=1, keepdims=True)            # (TB, 1)
    txt_global = jnp.sum(x, axis=1) / cnt                  # tiny divide, (TB, d)

    # Per-frame dot product (VALU mul + lane reduce). d is typically < or ~128
    # per block here, so the MXU matvec path is not worth the staging.
    sim = jnp.sum(v * txt_global[:, None, :], axis=-1)     # (TB, t_pad)
    sim = sim * vmask
    logits = sim * inv_temperature

    # Numerically stable binary_cross_entropy_with_logits (sum reduction here).
    bce = (jnp.maximum(logits, 0.0) - logits * y
           + jnp.log1p(jnp.exp(-jnp.abs(logits))))

    # Exclude frames introduced by sublane padding of t (static check).
    t_pad = bce.shape[1]
    if t_pad != t_valid:
        frame = jax.lax.broadcasted_iota(jnp.int32, bce.shape, 1)
        bce = jnp.where(frame < t_valid, bce, 0.0)

    out_ref[0, 0] = jnp.sum(bce)


def _pad_axis(x, axis, multiple):
    pad = (-x.shape[axis]) % multiple
    if pad == 0:
        return x
    widths = [(0, 0)] * x.ndim
    widths[axis] = (0, pad)
    return jnp.pad(x, widths)


def _pick_batch_tile(bs, per_row_bytes, budget_bytes):
    """Largest divisor of bs that keeps one block under budget.

    The 2-D mask blocks put TB on the sublane axis, so TB must be a multiple
    of 8 unless it equals the full batch.
    """
    candidates = [tb for tb in range(1, bs + 1)
                  if bs % tb == 0 and (tb == bs or tb % _SUBLANE == 0)]
    fitting = [tb for tb in candidates if tb * per_row_bytes <= budget_bytes]
    if fitting:
        return max(fitting)
    return min(candidates)


def ctc_loss(vid_feat, txt_feat, pos_mask, src_vid_mask=None, src_txt_mask=None,
             temperature=0.07):
    bs, t, d = vid_feat.shape
    n = txt_feat.shape[1]

    # None-mask paths of the PyTorch module == all-ones masks.
    if src_vid_mask is None:
        src_vid_mask = jnp.ones((bs, t), jnp.float32)
    if src_txt_mask is None:
        src_txt_mask = jnp.ones((bs, n), jnp.float32)

    # Lane/sublane-friendly layout: d -> multiple of 128 (lane axis of the
    # feature tensors), t/n -> multiples of 8 (sublane). Features keep their
    # native dtype (bf16 inputs halve HBM traffic); upcast happens per-block
    # inside the kernel.
    vid = _pad_axis(_pad_axis(vid_feat, 2, _LANE), 1, _SUBLANE)
    txt = _pad_axis(_pad_axis(txt_feat, 2, _LANE), 1, _SUBLANE)
    pos = _pad_axis(pos_mask.astype(jnp.float32), 1, _SUBLANE)
    vmask = _pad_axis(src_vid_mask.astype(jnp.float32), 1, _SUBLANE)
    tmask = _pad_axis(src_txt_mask.astype(jnp.float32), 1, _SUBLANE)

    t_pad, d_pad = vid.shape[1], vid.shape[2]
    n_pad = txt.shape[1]

    feat_bytes = jnp.dtype(vid.dtype).itemsize
    per_row = ((t_pad + n_pad) * d_pad * feat_bytes      # vid + txt features
               + (2 * t_pad + n_pad) * 4)                # pos/vid/txt masks (f32)
    # Keep one input block <= ~6 MiB so double-buffered inputs stay well under
    # the scoped-VMEM limits of v5e (16 MiB default) and v7x (32 of 64 MiB).
    tb = _pick_batch_tile(bs, per_row, budget_bytes=6 * 1024 * 1024)
    num_blocks = bs // tb

    kernel = functools.partial(_ctc_loss_kernel,
                               inv_temperature=1.0 / float(temperature),
                               t_valid=t)

    partial_sums = pl.pallas_call(
        kernel,
        out_shape=jax.ShapeDtypeStruct((num_blocks, 1), jnp.float32),
        grid=(num_blocks,),
        in_specs=[
            pl.BlockSpec((tb, t_pad, d_pad), lambda i: (i, 0, 0)),   # vid
            pl.BlockSpec((tb, n_pad, d_pad), lambda i: (i, 0, 0)),   # txt
            pl.BlockSpec((tb, t_pad), lambda i: (i, 0)),             # pos
            pl.BlockSpec((tb, t_pad), lambda i: (i, 0)),             # vid mask
            pl.BlockSpec((tb, n_pad), lambda i: (i, 0)),             # txt mask
        ],
        out_specs=pl.BlockSpec((1, 1), lambda i: (i, 0),
                               memory_space=pltpu.MemorySpace.SMEM),
        compiler_params=pltpu.CompilerParams(
            dimension_semantics=("parallel",),
            vmem_limit_bytes=32 * 1024 * 1024),
    )(vid, txt, pos, vmask, tmask)

    # PyTorch BCE mean is over all bs*t frames (including src_vid_mask==0 ones);
    # only frames introduced by sublane padding were excluded in-kernel.
    return jnp.sum(partial_sums) / (bs * t)


def _ctc_loss_ref(vid_feat, txt_feat, pos_mask, src_vid_mask, src_txt_mask,
                  temperature=0.07):
    """Pure-JAX reference mirroring the PyTorch forward."""
    eps = 1e-12
    v = vid_feat / jnp.maximum(
        jnp.linalg.norm(vid_feat, axis=2, keepdims=True), eps)
    x = txt_feat / jnp.maximum(
        jnp.linalg.norm(txt_feat, axis=2, keepdims=True), eps)
    x = x * src_txt_mask[:, :, None]
    txt_global = jnp.sum(x, axis=1) / jnp.sum(src_txt_mask, axis=1, keepdims=True)
    sim = jnp.einsum('btd,bd->bt', v, txt_global) * src_vid_mask
    logits = sim / temperature
    y = pos_mask.astype(jnp.int32).astype(jnp.float32)
    bce = (jnp.maximum(logits, 0.0) - logits * y
           + jnp.log1p(jnp.exp(-jnp.abs(logits))))
    return jnp.mean(bce)


if __name__ == "__main__":
    key = jax.random.PRNGKey(0)
    bs, t, n, d = 2, 16, 8, 32

    k1, k2, k3 = jax.random.split(key, 3)
    vid_feat = jax.random.normal(k1, (bs, t, d), dtype=jnp.float32)
    txt_feat = jax.random.normal(k2, (bs, n, d), dtype=jnp.float32)
    pos_mask = (jax.random.uniform(k3, (bs, t)) > 0.5).astype(jnp.float32)

    # padding-style masks (guaranteed non-empty per row)
    src_vid_mask = (jnp.arange(t)[None, :] < jnp.array([[t], [t - 4]])).astype(jnp.float32)
    src_txt_mask = (jnp.arange(n)[None, :] < jnp.array([[n], [n - 3]])).astype(jnp.float32)

    loss = ctc_loss(vid_feat, txt_feat, pos_mask, src_vid_mask, src_txt_mask,
                    temperature=0.07)
    loss = jax.block_until_ready(loss)

    ref = _ctc_loss_ref(vid_feat, txt_feat, pos_mask, src_vid_mask, src_txt_mask,
                        temperature=0.07)
    assert jnp.allclose(loss, ref, atol=1e-4, rtol=1e-4), (loss, ref)

    print("KERNEL_OK")
</pallas_src>

<mosaic_0001>
module attributes {stable_mosaic.version = 11 : i64} {
  func.func @_ctc_loss_kernel(%arg0: i32, %arg1: memref<2x16x128xf32, #tpu.memory_space<vmem>>, %arg2: memref<2x8x128xf32, #tpu.memory_space<vmem>>, %arg3: memref<2x16xf32, #tpu.memory_space<vmem>>, %arg4: memref<2x16xf32, #tpu.memory_space<vmem>>, %arg5: memref<2x8xf32, #tpu.memory_space<vmem>>, %arg6: memref<1x1xf32, #tpu.memory_space<smem>>) attributes {dimension_semantics = [#tpu.dimension_semantics<parallel>], iteration_bounds = array<i64: 1>, scalar_prefetch = 0 : i64, scratch_operands = 0 : i64, tpu.core_type = #tpu.core_type<tc>, window_params = [{transform_indices = @transform_0, window_bounds = array<i64: 2, 16, 128>}, {transform_indices = @transform_1, window_bounds = array<i64: 2, 8, 128>}, {transform_indices = @transform_2, window_bounds = array<i64: 2, 16>}, {transform_indices = @transform_3, window_bounds = array<i64: 2, 16>}, {transform_indices = @transform_4, window_bounds = array<i64: 2, 8>}, {transform_indices = @transform_5, window_bounds = array<i64: 1, 1>}]} {
    %c0 = arith.constant 0 : index
    %c0_0 = arith.constant 0 : index
    %c0_1 = arith.constant 0 : index
    %0 = vector.load %arg1[%c0, %c0_0, %c0_1] : memref<2x16x128xf32, #tpu.memory_space<vmem>>, vector<2x16x128xf32>
    %c0_2 = arith.constant 0 : index
    %c0_3 = arith.constant 0 : index
    %c0_4 = arith.constant 0 : index
    %1 = vector.load %arg2[%c0_2, %c0_3, %c0_4] : memref<2x8x128xf32, #tpu.memory_space<vmem>>, vector<2x8x128xf32>
    %c0_5 = arith.constant 0 : index
    %c0_6 = arith.constant 0 : index
    %2 = vector.load %arg3[%c0_5, %c0_6] : memref<2x16xf32, #tpu.memory_space<vmem>>, vector<2x16xf32>
    %c0_7 = arith.constant 0 : index
    %c0_8 = arith.constant 0 : index
    %3 = vector.load %arg4[%c0_7, %c0_8] : memref<2x16xf32, #tpu.memory_space<vmem>>, vector<2x16xf32>
    %c0_9 = arith.constant 0 : index
    %c0_10 = arith.constant 0 : index
    %4 = vector.load %arg5[%c0_9, %c0_10] : memref<2x8xf32, #tpu.memory_space<vmem>>, vector<2x8xf32>
    %5 = arith.mulf %0, %0 : vector<2x16x128xf32>
    %cst = arith.constant dense<0.000000e+00> : vector<2x16xf32>
    %6 = vector.multi_reduction <add>, %5, %cst [2] : vector<2x16x128xf32> to vector<2x16xf32>
    %7 = vector.shape_cast %6 : vector<2x16xf32> to vector<2x16x1xf32>
    %cst_11 = arith.constant 1.000000e-24 : f32
    %8 = vector.broadcast %cst_11 : f32 to vector<2x16x1xf32>
    %9 = arith.maximumf %7, %8 : vector<2x16x1xf32>
    %10 = math.rsqrt %9 : vector<2x16x1xf32>
    %11 = vector.broadcast %10 : vector<2x16x1xf32> to vector<2x16x128xf32>
    %12 = arith.mulf %0, %11 : vector<2x16x128xf32>
    %13 = arith.mulf %1, %1 : vector<2x8x128xf32>
    %cst_12 = arith.constant dense<0.000000e+00> : vector<2x8xf32>
    %14 = vector.multi_reduction <add>, %13, %cst_12 [2] : vector<2x8x128xf32> to vector<2x8xf32>
    %15 = vector.shape_cast %14 : vector<2x8xf32> to vector<2x8x1xf32>
    %cst_13 = arith.constant 1.000000e-24 : f32
    %16 = vector.broadcast %cst_13 : f32 to vector<2x8x1xf32>
    %17 = arith.maximumf %15, %16 : vector<2x8x1xf32>
    %18 = math.rsqrt %17 : vector<2x8x1xf32>
    %19 = vector.broadcast %18 : vector<2x8x1xf32> to vector<2x8x128xf32>
    %20 = arith.mulf %1, %19 : vector<2x8x128xf32>
    %21 = vector.shape_cast %4 : vector<2x8xf32> to vector<2x8x1xf32>
    %22 = vector.broadcast %21 : vector<2x8x1xf32> to vector<2x8x128xf32>
    %23 = arith.mulf %20, %22 : vector<2x8x128xf32>
    %cst_14 = arith.constant dense<0.000000e+00> : vector<2xf32>
    %24 = vector.multi_reduction <add>, %4, %cst_14 [1] : vector<2x8xf32> to vector<2xf32>
    %25 = vector.shape_cast %24 : vector<2xf32> to vector<2x1xf32>
    %cst_15 = arith.constant dense<0.000000e+00> : vector<2x128xf32>
    %26 = vector.multi_reduction <add>, %23, %cst_15 [1] : vector<2x8x128xf32> to vector<2x128xf32>
    %27 = vector.broadcast %25 : vector<2x1xf32> to vector<2x128xf32>
    %28 = arith.divf %26, %27 : vector<2x128xf32>
    %29 = vector.shape_cast %28 : vector<2x128xf32> to vector<2x1x128xf32>
    %30 = vector.broadcast %29 : vector<2x1x128xf32> to vector<2x16x128xf32>
    %31 = arith.mulf %12, %30 : vector<2x16x128xf32>
    %cst_16 = arith.constant dense<0.000000e+00> : vector<2x16xf32>
    %32 = vector.multi_reduction <add>, %31, %cst_16 [2] : vector<2x16x128xf32> to vector<2x16xf32>
    %33 = arith.mulf %32, %3 : vector<2x16xf32>
    %cst_17 = arith.constant 14.2857141 : f32
    %34 = vector.broadcast %cst_17 : f32 to vector<2x16xf32>
    %35 = arith.mulf %33, %34 : vector<2x16xf32>
    %cst_18 = arith.constant 0.000000e+00 : f32
    %36 = vector.broadcast %cst_18 : f32 to vector<2x16xf32>
    %37 = arith.maximumf %35, %36 : vector<2x16xf32>
    %38 = arith.mulf %35, %2 : vector<2x16xf32>
    %39 = arith.subf %37, %38 : vector<2x16xf32>
    %40 = math.absf %35 : vector<2x16xf32>
    %cst_19 = arith.constant 0.000000e+00 : f32
    %41 = vector.broadcast %cst_19 : f32 to vector<2x16xf32>
    %42 = arith.subf %41, %40 : vector<2x16xf32>
    %43 = math.exp %42 : vector<2x16xf32>
    %44 = math.log1p %43 : vector<2x16xf32>
    %45 = arith.addf %39, %44 : vector<2x16xf32>
    %46 = vector.shape_cast %45 : vector<2x16xf32> to vector<1x2x16xf32>
    %cst_20 = arith.constant dense<0.000000e+00> : vector<1xf32>
    %47 = vector.multi_reduction <add>, %46, %cst_20 [1, 2] : vector<1x2x16xf32> to vector<1xf32>
    %48 = vector.shape_cast %47 : vector<1xf32> to vector<1x1x1xf32>
    %49 = vector.extract %48[0, 0, 0] : f32 from vector<1x1x1xf32>
    %c0_21 = arith.constant 0 : index
    %c0_22 = arith.constant 0 : index
    %50 = memref.load %arg6[%c0_21, %c0_22] : memref<1x1xf32, #tpu.memory_space<smem>>
    memref.store %49, %arg6[%c0_21, %c0_22] : memref<1x1xf32, #tpu.memory_space<smem>>
    return
  }
  func.func @transform_0(%arg0: i32) -> (i32, i32, i32) {
    %c0_i32 = arith.constant 0 : i32
    %c0_i32_0 = arith.constant 0 : i32
    %c0_i32_1 = arith.constant 0 : i32
    return %arg0, %c0_i32, %c0_i32_0 : i32, i32, i32
  }
  func.func @transform_1(%arg0: i32) -> (i32, i32, i32) {
    %c0_i32 = arith.constant 0 : i32
    %c0_i32_0 = arith.constant 0 : i32
    %c0_i32_1 = arith.constant 0 : i32
    return %arg0, %c0_i32, %c0_i32_0 : i32, i32, i32
  }
  func.func @transform_2(%arg0: i32) -> (i32, i32) {
    %c0_i32 = arith.constant 0 : i32
    %c0_i32_0 = arith.constant 0 : i32
    return %arg0, %c0_i32 : i32, i32
  }
  func.func @transform_3(%arg0: i32) -> (i32, i32) {
    %c0_i32 = arith.constant 0 : i32
    %c0_i32_0 = arith.constant 0 : i32
    return %arg0, %c0_i32 : i32, i32
  }
  func.func @transform_4(%arg0: i32) -> (i32, i32) {
    %c0_i32 = arith.constant 0 : i32
    %c0_i32_0 = arith.constant 0 : i32
    return %arg0, %c0_i32 : i32, i32
  }
  func.func @transform_5(%arg0: i32) -> (i32, i32) {
    %c0_i32 = arith.constant 0 : i32
    %c0_i32_0 = arith.constant 0 : i32
    return %arg0, %c0_i32 : i32, i32
  }
}

</mosaic_0001>

<llo_original>
// kernel: tpu_custom_call.1
$region0: #{tpu_custom_call.1}
  #allocation0 [shape = 'u32[]', space=smem, size = 0x4, offset = 0x4, fixed_abs, tag = 'smem constant byte address 0x4 - core index']
  #allocation1 [shape = 'u32[72,128]{1,0:T(1,128)}', space=vmem, size = 0x9000, scoped, tag = 'internal scratch']
  %s0 = inlined_call_operand.hbm [shape: f32[2,16,128], index: 0, kind: input, shape index: {}]
  %s1 = inlined_call_operand.hbm [shape: f32[2,8,128], index: 1, kind: input, shape index: {}]
  %s2 = inlined_call_operand.hbm [shape: f32[2,16], index: 2, kind: input, shape index: {}]
  %s3 = inlined_call_operand.vmem [shape: f32[2,16], index: 3, kind: input, shape index: {}]
  %s4 = inlined_call_operand.hbm [shape: f32[2,8], index: 4, kind: input, shape index: {}]
  %s5 = inlined_call_operand.hbm [shape: f32[1,1], index: 5, kind: output, shape index: {}]
  %s6 = sld [smem:[#allocation0]]
  $region46: #{tpu_custom_call.1} parent=0
    _
  %s8 = ssub.s32 1, %s6
  %s9 = scalar_select 0, %s8, %s6
  $region1: #{tpu_custom_call.1} parent=0
    #allocation2 [shape = 'u8[16384]{0}', space=vmem, size = 0x4000, scoped, tag = 'input window, operand 0, single buffered']
    #allocation3 [shape = 's32[1]{0}', space=sflag, size = 0x4, scoped, tag = 'scoped memory for tpu_custom_call.1']
    #allocation4 [shape = 's32[1]{0}', space=sflag, size = 0x4, scoped, tag = 'scoped memory for tpu_custom_call.1']
    #allocation5 [shape = 'u8[8192]{0}', space=vmem, size = 0x2000, scoped, tag = 'input window, operand 1, single buffered']
    #allocation6 [shape = 's32[1]{0}', space=sflag, size = 0x4, scoped, tag = 'scoped memory for tpu_custom_call.1']
    #allocation7 [shape = 'u8[1024]{0}', space=vmem, size = 0x400, scoped, tag = 'input window, operand 2, single buffered']
    #allocation8 [shape = 'u8[1024]{0}', space=vmem, size = 0x400, scoped, tag = 'input window, operand 4, single buffered']
    #allocation9 [shape = 's32[1]{0}', space=sflag, size = 0x4, scoped, tag = 'scoped memory for tpu_custom_call.1']
    #allocation10 [shape = 'u8[512]{0}', space=smem, size = 0x200, scoped, tag = 'output window, operand 0, single buffered']
    %10 = vsyncpa [#allocation3], 0
    %11 = vsyncpa [#allocation6], 0
    %12 = vsyncpa [#allocation9], 0
    %13 = vsyncpa [#allocation4], 0
    // Predicated region
    $region2: #{tpu_custom_call.1} parent=1 // pred_check
      _
    $region3: #{tpu_custom_call.1} parent=1 // pred_check_branch
      %15 = sbr.rel (0) target = $region5
    $region4: #{tpu_custom_call.1} parent=1 // pred_region
      %17 = vsyncadd [#allocation3], 0
      %s18 = sshll.u32 %s0, 4
      %s19 = int_to_ptr.hbm [resolvable:$true] %s18
      %s20 = sshll.u32 [#allocation2], 4
      %s21 = int_to_ptr.vmem [resolvable:$true] %s20
      %26 = dma.hbm_to_vmem [thread:$0]  %s19, 512, %s21, [#allocation3], 128, 128, 8
    $region5: #{tpu_custom_call.1} parent=1 // pred_fallthru
      _
    // Predicated region
    $region6: #{tpu_custom_call.1} parent=1 // pred_check
      _
    $region7: #{tpu_custom_call.1} parent=1 // pred_check_branch
      %28 = sbr.rel (0) target = $region9
    $region8: #{tpu_custom_call.1} parent=1 // pred_region
      %30 = vsyncadd [#allocation6], 0
      %s31 = sshll.u32 %s1, 4
      %s32 = int_to_ptr.hbm [resolvable:$true] %s31
      %s33 = sshll.u32 [#allocation5], 4
      %s34 = int_to_ptr.vmem [resolvable:$true] %s33
      %39 = dma.hbm_to_vmem [thread:$0]  %s32, 256, %s34, [#allocation6], 128, 128, 8
    $region9: #{tpu_custom_call.1} parent=1 // pred_fallthru
      _
    // Predicated region
    $region10: #{tpu_custom_call.1} parent=1 // pred_check
      _
    $region11: #{tpu_custom_call.1} parent=1 // pred_check_branch
      %41 = sbr.rel (0) target = $region13
    $region12: #{tpu_custom_call.1} parent=1 // pred_region
      %43 = vsyncadd [#allocation6], 0
      %s45 = sshll.u32 %s2, 4
      %s46 = int_to_ptr.hbm [resolvable:$true] %s45
      %s47 = sshll.u32 [#allocation7], 4
      %s48 = int_to_ptr.vmem [resolvable:$true] %s47
      %50 = dma.hbm_to_vmem [thread:$0]  %s46, 32, %s48, [#allocation6]
    $region13: #{tpu_custom_call.1} parent=1 // pred_fallthru
      _
    // Predicated region
    $region14: #{tpu_custom_call.1} parent=1 // pred_check
      _
    $region15: #{tpu_custom_call.1} parent=1 // pred_check_branch
      %52 = sbr.rel (0) target = $region17
    $region16: #{tpu_custom_call.1} parent=1 // pred_region
      _
    $region17: #{tpu_custom_call.1} parent=1 // pred_fallthru
      _
    // Predicated region
    $region18: #{tpu_custom_call.1} parent=1 // pred_check
      _
    $region19: #{tpu_custom_call.1} parent=1 // pred_check_branch
      %54 = sbr.rel (0) target = $region21
    $region20: #{tpu_custom_call.1} parent=1 // pred_region
      %56 = vsyncadd [#allocation9], 0
      %s58 = sshll.u32 %s4, 4
      %s59 = int_to_ptr.hbm [resolvable:$true] %s58
      %s60 = sshll.u32 [#allocation8], 4
      %s61 = int_to_ptr.vmem [resolvable:$true] %s60
      %63 = dma.hbm_to_vmem [thread:$0]  %s59, 32, %s61, [#allocation9]
    $region21: #{tpu_custom_call.1} parent=1 // pred_fallthru
      _
    // Predicated region
    $region22: #{tpu_custom_call.1} parent=1 // pred_check
      _
    $region23: #{tpu_custom_call.1} parent=1 // pred_check_branch
      %65 = sbr.rel (0) target = $region25
    $region24: #{tpu_custom_call.1} parent=1 // pred_region
      %67 = dma.done [#allocation3], 512
    $region25: #{tpu_custom_call.1} parent=1 // pred_fallthru
      _
    // Predicated region
    $region26: #{tpu_custom_call.1} parent=1 // pred_check
      _
    $region27: #{tpu_custom_call.1} parent=1 // pred_check_branch
      %69 = sbr.rel (0) target = $region29
    $region28: #{tpu_custom_call.1} parent=1 // pred_region
      %71 = dma.done [#allocation6], 256
    $region29: #{tpu_custom_call.1} parent=1 // pred_fallthru
      _
    // Predicated region
    $region30: #{tpu_custom_call.1} parent=1 // pred_check
      _
    $region31: #{tpu_custom_call.1} parent=1 // pred_check_branch
      %73 = sbr.rel (0) target = $region33
    $region32: #{tpu_custom_call.1} parent=1 // pred_region
      %75 = dma.done [#allocation6], 32
    $region33: #{tpu_custom_call.1} parent=1 // pred_fallthru
      _
    // Predicated region
    $region34: #{tpu_custom_call.1} parent=1 // pred_check
      _
    $region35: #{tpu_custom_call.1} parent=1 // pred_check_branch
      %77 = sbr.rel (0) target = $region37
    $region36: #{tpu_custom_call.1} parent=1 // pred_region
      %79 = dma.done [#allocation9], 32
    $region37: #{tpu_custom_call.1} parent=1 // pred_fallthru
      _
    %v80 = vld [vmem:[#allocation2] sm:$0xff]
    %v81 = vld [vmem:[#allocation2 + $0x8] sm:$0xff]
    %v82 = vld [vmem:[#allocation2 + $0x10] sm:$0xff]
    %v83 = vld [vmem:[#allocation2 + $0x18] sm:$0xff]
    %v84 = vld [vmem:[#allocation5] sm:$0xff]
    %v85 = vld [vmem:[#allocation5 + $0x8] sm:$0xff]
    %v86 = vld [vmem:[#allocation7] sm:$0x3]
    %v87 = vld [vmem:[%s3] sm:$0x3]
    %v88 = vld [vmem:[#allocation8] sm:$0x3]
    %v89 = vmul.f32 %v80, %v80
    %v90 = vmul.f32 %v81, %v81
    %v91 = vmul.f32 %v82, %v82
    %v92 = vmul.f32 %v83, %v83
    %93 = vadd.xlane.f32.xlu0 %v89
    %v94 = vpop.xlane.xlu0 %93
    %95 = vadd.xlane.f32.xlu0 %v90
    %v96 = vpop.xlane.xlu0 %95
    %97 = vadd.xlane.f32.xlu0 %v91
    %v98 = vpop.xlane.xlu0 %97
    %99 = vadd.xlane.f32.xlu0 %v92
    %v100 = vpop.xlane.xlu0 %99
    %v101 = vmax.f32 %v94, 1e-24
    %v102 = vmax.f32 %v96, 1e-24
    %v103 = vmax.f32 %v98, 1e-24
    %v104 = vmax.f32 %v100, 1e-24
    %v105 = vrsqrt.pop %v101
    %v106 = vmul.f32 %v105, %v101
    %v107 = vmul.f32 %v106, %v105
    %v108 = vmul.f32 0.5, %v107
    %v109 = vsub.f32 1.5, %v108
    %v110 = vmul.f32 %v105, %v109
    %vm111 = vweird.f32 %v101
    %vm112 = vweird.f32 %v105
    %vm113 = vmor %vm111, %vm112
    %v114 = vsel %vm113, %v105, %v110
    %v115 = vrsqrt.pop %v102
    %v116 = vmul.f32 %v115, %v102
    %v117 = vmul.f32 %v116, %v115
    %v118 = vmul.f32 0.5, %v117
    %v119 = vsub.f32 1.5, %v118
    %v120 = vmul.f32 %v115, %v119
    %vm121 = vweird.f32 %v102
    %vm122 = vweird.f32 %v115
    %vm123 = vmor %vm121, %vm122
    %v124 = vsel %vm123, %v115, %v120
    %v125 = vrsqrt.pop %v103
    %v126 = vmul.f32 %v125, %v103
    %v127 = vmul.f32 %v126, %v125
    %v128 = vmul.f32 0.5, %v127
    %v129 = vsub.f32 1.5, %v128
    %v130 = vmul.f32 %v125, %v129
    %vm131 = vweird.f32 %v103
    %vm132 = vweird.f32 %v125
    %vm133 = vmor %vm131, %vm132
    %v134 = vsel %vm133, %v125, %v130
    %v135 = vrsqrt.pop %v104
    %v136 = vmul.f32 %v135, %v104
    %v137 = vmul.f32 %v136, %v135
    %v138 = vmul.f32 0.5, %v137
    %v139 = vsub.f32 1.5, %v138
    %v140 = vmul.f32 %v135, %v139
    %vm141 = vweird.f32 %v104
    %vm142 = vweird.f32 %v135
    %vm143 = vmor %vm141, %vm142
    %v144 = vsel %vm143, %v135, %v140
    %v145 = vmul.f32 %v80, %v114
    %v146 = vmul.f32 %v81, %v124
    %v147 = vmul.f32 %v82, %v134
    %v148 = vmul.f32 %v83, %v144
    %v149 = vmul.f32 %v84, %v84
    %v150 = vmul.f32 %v85, %v85
    %151 = vadd.xlane.f32.xlu0 %v149
    %v152 = vpop.xlane.xlu0 %151
    %153 = vadd.xlane.f32.xlu0 %v150
    %v154 = vpop.xlane.xlu0 %153
    %v155 = vmax.f32 %v152, 1e-24
    %v156 = vmax.f32 %v154, 1e-24
    %v157 = vrsqrt.pop %v155
    %v158 = vmul.f32 %v157, %v155
    %v159 = vmul.f32 %v158, %v157
    %v160 = vmul.f32 0.5, %v159
    %v161 = vsub.f32 1.5, %v160
    %v162 = vmul.f32 %v157, %v161
    %vm163 = vweird.f32 %v155
    %vm164 = vweird.f32 %v157
    %vm165 = vmor %vm163, %vm164
    %v166 = vsel %vm165, %v157, %v162
    %v167 = vrsqrt.pop %v156
    %v168 = vmul.f32 %v167, %v156
    %v169 = vmul.f32 %v168, %v167
    %v170 = vmul.f32 0.5, %v169
    %v171 = vsub.f32 1.5, %v170
    %v172 = vmul.f32 %v167, %v171
    %vm173 = vweird.f32 %v156
    %vm174 = vweird.f32 %v167
    %vm175 = vmor %vm173, %vm174
    %v176 = vsel %vm175, %v167, %v172
    %v177 = vmul.f32 %v84, %v166
    %v178 = vmul.f32 %v85, %v176
    %v179 = vperm.slane %v88, 0
    %v180 = vlaneseq
    %v181 = vshrl.u32 %v180, 7
    %183 = vset.pattern.permute.xlu0 %v181
    %184 = vperm.xlu0 %183, %v179
    %v185 = vpop.permute.xlu0 %184
    %v186 = vperm.slane %v88, 1
    %v187 = vlaneseq
    %v188 = vshrl.u32 %v187, 7
    %190 = vset.pattern.permute.xlu0 %v188
    %191 = vperm.xlu0 %190, %v186
    %v192 = vpop.permute.xlu0 %191
    %v193 = vmul.f32 %v177, %v185
    %v194 = vmul.f32 %v178, %v192
    %vm195 = vcmask 58368
    %v196 = vsel %vm195, %v88, 0.0
    %197 = vadd.xlane.f32.xlu0 %v196
    %v198 = vpop.xlane.xlu0 %197
    %v199 = vrot.slane %v193, 4
    %v200 = vadd.f32 %v193, %v199
    %v201 = vrot.slane %v200, 2
    %v202 = vadd.f32 %v200, %v201
    %v203 = vrot.slane %v202, 1
    %v204 = vadd.f32 %v202, %v203
    %v205 = vrot.slane %v194, 4
    %v206 = vadd.f32 %v194, %v205
    %v207 = vrot.slane %v206, 2
    %v208 = vadd.f32 %v206, %v207
    %v209 = vrot.slane %v208, 1
    %v210 = vadd.f32 %v208, %v209
    %v212 = vrot.slane %v198, 1
    %v215 = vrcp.pop %v198
    %v216 = vmul.f32 %v198, %v215
    %v217 = vsub.f32 1.0, %v216
    %v218 = vmul.f32 %v215, %v217
    %v219 = vadd.f32 %v215, %v218
    %vm220 = vweird.f32 %v198
    %vm221 = vweird.f32 %v215
    %vm222 = vmor %vm220, %vm221
    %v223 = vsel %vm222, %v215, %v219
    %v224 = vand.u32 2147483647, %v198
    %vm225 = vcmp.eq.f32.partialorder %v224, 8.507059e+37
    %v226 = vand.u32 %v198, 2147483648
    %v227 = vor.u32 1.1754944e-38, %v226
    %v228 = vsel %vm225, %v227, %v223
    %v229 = vmul.f32 %v204, %v228
    %v230 = vrcp.pop %v212
    %v231 = vmul.f32 %v212, %v230
    %v232 = vsub.f32 1.0, %v231
    %v233 = vmul.f32 %v230, %v232
    %v234 = vadd.f32 %v230, %v233
    %vm235 = vweird.f32 %v212
    %vm236 = vweird.f32 %v230
    %vm237 = vmor %vm235, %vm236
    %v238 = vsel %vm237, %v230, %v234
    %v239 = vand.u32 2147483647, %v212
    %vm240 = vcmp.eq.f32.partialorder %v239, 8.507059e+37
    %v241 = vand.u32 %v212, 2147483648
    %v242 = vor.u32 1.1754944e-38, %v241
    %v243 = vsel %vm240, %v242, %v238
    %v244 = vmul.f32 %v210, %v243
    %v245 = vperm.slane %v229, 0
    %v246 = vperm.slane %v244, 0
    %v247 = vmul.f32 %v145, %v245
    %v248 = vmul.f32 %v146, %v245
    %v249 = vmul.f32 %v147, %v246
    %v250 = vmul.f32 %v148, %v246
    %251 = vadd.xlane.f32.xlu0 %v247
    %v252 = vpop.xlane.xlu0 %251
    %253 = vadd.xlane.f32.xlu0 %v248
    %v254 = vpop.xlane.xlu0 %253
    %255 = vadd.xlane.f32.xlu0 %v249
    %v256 = vpop.xlane.xlu0 %255
    %257 = vadd.xlane.f32.xlu0 %v250
    %v258 = vpop.xlane.xlu0 %257
    %v260 = vperm.slane %v87, 0
    %v261 = vlaneseq
    %v262 = vshrl.u32 %v261, 7
    %264 = vset.pattern.permute.xlu0 %v262
    %265 = vperm.xlu0 %264, %v260
    %v266 = vpop.permute.xlu0 %265
    %v267 = vlaneseq
    %v268 = vshrl.u32 %v267, 7
    %v269 = vadd.s32 %v268, 8
    %270 = vset.pattern.permute.xlu0 %v269
    %271 = vperm.xlu0 %270, %v260
    %v272 = vpop.permute.xlu0 %271
    %v273 = vperm.slane %v87, 1
    %v274 = vlaneseq
    %v275 = vshrl.u32 %v274, 7
    %277 = vset.pattern.permute.xlu0 %v275
    %278 = vperm.xlu0 %277, %v273
    %v279 = vpop.permute.xlu0 %278
    %v280 = vlaneseq
    %v281 = vshrl.u32 %v280, 7
    %v282 = vadd.s32 %v281, 8
    %283 = vset.pattern.permute.xlu0 %v282
    %284 = vperm.xlu0 %283, %v273
    %v285 = vpop.permute.xlu0 %284
    %v290 = vmul.f32 %v252, %v266
    %v291 = vmul.f32 %v254, %v272
    %v292 = vmul.f32 %v256, %v279
    %v293 = vmul.f32 %v258, %v285
    %v294 = vmul.f32 %v290, 14.285714
    %v295 = vmul.f32 %v291, 14.285714
    %v296 = vmul.f32 %v292, 14.285714
    %v297 = vmul.f32 %v293, 14.285714
    %v298 = vmax.f32 %v294, 0.0
    %v299 = vmax.f32 %v295, 0.0
    %v300 = vmax.f32 %v296, 0.0
    %v301 = vmax.f32 %v297, 0.0
    %v303 = vperm.slane %v86, 0
    %v304 = vlaneseq
    %v305 = vshrl.u32 %v304, 7
    %307 = vset.pattern.permute.xlu0 %v305
    %308 = vperm.xlu0 %307, %v303
    %v309 = vpop.permute.xlu0 %308
    %v310 = vlaneseq
    %v311 = vshrl.u32 %v310, 7
    %v312 = vadd.s32 %v311, 8
    %313 = vset.pattern.permute.xlu0 %v312
    %314 = vperm.xlu0 %313, %v303
    %v315 = vpop.permute.xlu0 %314
    %v316 = vperm.slane %v86, 1
    %v317 = vlaneseq
    %v318 = vshrl.u32 %v317, 7
    %320 = vset.pattern.permute.xlu0 %v318
    %321 = vperm.xlu0 %320, %v316
    %v322 = vpop.permute.xlu0 %321
    %v323 = vlaneseq
    %v324 = vshrl.u32 %v323, 7
    %v325 = vadd.s32 %v324, 8
    %326 = vset.pattern.permute.xlu0 %v325
    %327 = vperm.xlu0 %326, %v316
    %v328 = vpop.permute.xlu0 %327
    %v333 = vmul.f32 %v294, %v309
    %v334 = vmul.f32 %v295, %v315
    %v335 = vmul.f32 %v296, %v322
    %v336 = vmul.f32 %v297, %v328
    %v337 = vsub.f32 %v298, %v333
    %v338 = vsub.f32 %v299, %v334
    %v339 = vsub.f32 %v300, %v335
    %v340 = vsub.f32 %v301, %v336
    %v341 = vand.u32 2147483647, %v294
    %v342 = vand.u32 2147483647, %v295
    %v343 = vand.u32 2147483647, %v296
    %v344 = vand.u32 2147483647, %v297
    %v345 = vsub.f32 0.0, %v341
    %v346 = vsub.f32 0.0, %v342
    %v347 = vsub.f32 0.0, %v343
    %v348 = vsub.f32 0.0, %v344
    %v349 = vmul.f32 %v345, 1.442695
    %v350 = vpow.pop %v349
    %v351 = vmul.f32 %v346, 1.442695
    %v352 = vpow.pop %v351
    %v353 = vmul.f32 %v347, 1.442695
    %v354 = vpow.pop %v353
    %v355 = vmul.f32 %v348, 1.442695
    %v356 = vpow.pop %v355
    %v357 = vadd.f32 %v350, 1.0
    %v358 = vlog2.pop %v357
    %v359 = vmul.f32 %v358, 0.6931472
    %v360 = vmul.f32 -0.5, %v350
    %v361 = vadd.f32 %v360, 1.0
    %v362 = vmul.f32 %v361, %v350
    %v363 = vand.u32 2147483647, %v350
    %vm364 = vcmp.lt.f32.partialorder %v363, 0.0004427343
    %v365 = vsel %vm364, %v362, %v359
    %v366 = vadd.f32 %v352, 1.0
    %v367 = vlog2.pop %v366
    %v368 = vmul.f32 %v367, 0.6931472
    %v369 = vmul.f32 -0.5, %v352
    %v370 = vadd.f32 %v369, 1.0
    %v371 = vmul.f32 %v370, %v352
    %v372 = vand.u32 2147483647, %v352
    %vm373 = vcmp.lt.f32.partialorder %v372, 0.0004427343
    %v374 = vsel %vm373, %v371, %v368
    %v375 = vadd.f32 %v354, 1.0
    %v376 = vlog2.pop %v375
    %v377 = vmul.f32 %v376, 0.6931472
    %v378 = vmul.f32 -0.5, %v354
    %v379 = vadd.f32 %v378, 1.0
    %v380 = vmul.f32 %v379, %v354
    %v381 = vand.u32 2147483647, %v354
    %vm382 = vcmp.lt.f32.partialorder %v381, 0.0004427343
    %v383 = vsel %vm382, %v380, %v377
    %v384 = vadd.f32 %v356, 1.0
    %v385 = vlog2.pop %v384
    %v386 = vmul.f32 %v385, 0.6931472
    %v387 = vmul.f32 -0.5, %v356
    %v388 = vadd.f32 %v387, 1.0
    %v389 = vmul.f32 %v388, %v356
    %v390 = vand.u32 2147483647, %v356
    %vm391 = vcmp.lt.f32.partialorder %v390, 0.0004427343
    %v392 = vsel %vm391, %v389, %v386
    %v393 = vadd.f32 %v337, %v365
    %v394 = vadd.f32 %v338, %v374
    %v395 = vadd.f32 %v339, %v383
    %v396 = vadd.f32 %v340, %v392
    %401 = vset.pattern.permute.xlu0 0
    %402 = vperm.xlu0 %401, %v393
    %v403 = vpop.permute.xlu0 %402
    %404 = vset.pattern.permute.xlu0 0
    %405 = vperm.xlu0 %404, %v394
    %v406 = vpop.permute.xlu0 %405
    %407 = vset.pattern.permute.xlu0 0
    %408 = vperm.xlu0 %407, %v395
    %v409 = vpop.permute.xlu0 %408
    %410 = vset.pattern.permute.xlu0 0
    %411 = vperm.xlu0 %410, %v396
    %v412 = vpop.permute.xlu0 %411
    %v413 = vlaneseq
    %v414 = vand.u32 %v413, 127
    %v415 = vperm.slane %v403, %v414
    %v416 = vadd.s32 %v414, 4294967288
    %v417 = vperm.slane %v406, %v416
    %vm418 = vcmask 130112
    %v419 = vsel %vm418, %v417, %v415
    %v420 = vperm.slane %v409, %v414
    %v421 = vperm.slane %v412, %v416
    %v422 = vsel %vm418, %v421, %v420
    %vm423 = vcmask 1041409
    %v424 = vsel %vm423, %v422, %v419
    %vm426 = vcmask 123904
    %v427 = vsel %vm426, %v424, 0.0
    %428 = vadd.xlane.f32.xlu0 %v427
    %v429 = vpop.xlane.xlu0 %428
    %v430 = vrot.slane %v429, 4
    %v431 = vadd.f32 %v429, %v430
    %v432 = vrot.slane %v431, 2
    %v433 = vadd.f32 %v431, %v432
    %v434 = vrot.slane %v433, 1
    %v435 = vadd.f32 %v433, %v434
    %s436 = vtos %v435
    %s437 = scalar_lea.smem [#allocation10], 0
    %438 = sst [smem:[%s437]] %s436
    // Predicated region
    $region38: #{tpu_custom_call.1} parent=1 // pred_check
      _
    $region39: #{tpu_custom_call.1} parent=1 // pred_check_branch
      %440 = sbr.rel (0) target = $region41
    $region40: #{tpu_custom_call.1} parent=1 // pred_region
      %442 = vsyncadd [#allocation4], 0
      %s444 = sshll.u32 %s5, 4
      %s445 = int_to_ptr.hbm [resolvable:$true] %s444
      %447 = dma.smem_to_hbm [#allocation10], 16, %s445, [#allocation4]
    $region41: #{tpu_custom_call.1} parent=1 // pred_fallthru
      _
    // Predicated region
    $region42: #{tpu_custom_call.1} parent=1 // pred_check
      _
    $region43: #{tpu_custom_call.1} parent=1 // pred_check_branch
      %449 = sbr.rel (0) target = $region45
    $region44: #{tpu_custom_call.1} parent=1 // pred_region
      %451 = dma.done [#allocation4], 16
    $region45: #{tpu_custom_call.1} parent=1 // pred_fallthru
      _
    %452 = sfence
    %453 = vsyncpa [#allocation3], 1
    %454 = vsyncpa [#allocation6], 1
    %455 = vsyncpa [#allocation9], 1
    %456 = vsyncpa [#allocation4], 1

</llo_original>
